<compile_context>
chip_gen: v5e
topology: v5e:2x2
jax: 0.10.0
libtpu: 0.0.40
codegen_flags: <defaults>
</compile_context>

<pallas_src>
import jax
import jax.numpy as jnp
import numpy as np
from jax import lax
from jax.experimental import pallas as pl
from jax.experimental.pallas import tpu as pltpu

N, SEQ, DIM, HEADS = 2, 8, 32, 8
HEAD_DIM = DIM // HEADS


def aft_kernel(x_ref, a2_ref, wkv_ref, b_all_ref, wo_ref, out_ref):
    NS, D = x_ref.shape            # (N*S, D): batch*seq in sublanes, channels in lanes
    S = a2_ref.shape[0]
    n_b = NS // S
    D2 = 2 * D

    x_bf = x_ref[...].astype(jnp.bfloat16)

    # Fused K|V projection: one bf16 MXU dot with f32 accumulation, then the
    # packed (1, 2D) bias add in f32.  k / v are lane slices of the result.
    # NOTE: the PyTorch reference computes self.query(x) but never uses it
    # (dead code), so the query projection is intentionally omitted.
    kv = jnp.dot(x_bf, wkv_ref[...], preferred_element_type=jnp.float32)
    kv = kv + b_all_ref[:, :D2]
    k = kv[:, :D]
    v = kv[:, D:D2]

    # exp(k) and lane-packed [exp(k)*v | exp(k)] so one multiply+reduce gives
    # both numerator and denominator.  All elementwise math stays f32.
    ek = jnp.exp(k)                                           # (NS, D)
    s_pack = jnp.concatenate([ek * v, ek], axis=-1)           # (NS, 2D)
    s_pack = s_pack.reshape(n_b, S, D2)                       # (N, S, 2D)

    # nd[n,t,:] = sum_i a2[t,i,:] * s_pack[n,i,:]  -> [num | den] in lanes.
    nd = jnp.sum(a2_ref[...][None, :, :, :] * s_pack[:, None, :, :], axis=2)
    nd = nd.reshape(NS, D2)
    num = nd[:, :D]
    den = nd[:, D:D2]
    aft = num * pl.reciprocal(den, approx=True)               # den > 0 always

    # fc_out projection on the whole flattened slab; single lane-dense store.
    out_ref[...] = jnp.dot(aft.astype(jnp.bfloat16), wo_ref[...],
                           preferred_element_type=jnp.float32) + b_all_ref[:, D2:]


@jax.jit
def aft_forward(x, a2, wkv, b_all, wo):
    n_b, S, D = x.shape
    # Layout plumbing only: flatten batch*seq so the kernel sees one lane-dense
    # (N*S, D) slab.  All other prep (a2, wkv, b_all, bf16 weights) is done once
    # at parameter-preparation time, not per call.
    x_flat = x.reshape(n_b * S, D)

    vmem = pl.BlockSpec(memory_space=pltpu.MemorySpace.VMEM)
    out_flat = pl.pallas_call(
        aft_kernel,
        out_shape=jax.ShapeDtypeStruct((n_b * S, D), jnp.float32),
        in_specs=[vmem] * 5,
        out_specs=vmem,
    )(x_flat, a2, wkv, b_all, wo)
    return out_flat.reshape(n_b, S, D)


def prepare_params(w_aft, wk, bk, wv, bv, wo, bo):
    """One-time parameter preparation (outside the jitted per-call path)."""
    H, S, _ = w_aft.shape
    D = wk.shape[0]
    hd = D // H
    # Masked positional term: exp only on the kept (causal) entries, heads
    # expanded into the lane dim (lane d -> head d // hd), then duplicated
    # along lanes so one multiply+reduce serves both num (ekv) and den (ek).
    t_idx = jnp.arange(S)[:, None]
    i_idx = jnp.arange(S)[None, :]
    mask = (i_idx <= t_idx)[None]                                   # (1, S, S)
    a = jnp.where(mask, jnp.exp(w_aft), 0.0)                        # (H, S, S)
    a_full = jnp.repeat(jnp.transpose(a, (1, 2, 0)), hd, axis=-1)   # (S, S, D)
    a2 = jnp.concatenate([a_full, a_full], axis=-1)                 # (S, S, 2D)

    wkv = jnp.concatenate([wk, wv], axis=1).astype(jnp.bfloat16)    # (D, 2D) bf16
    wo_bf = wo.astype(jnp.bfloat16)                                 # (D, D)  bf16
    b_all = jnp.concatenate([bk, bv, bo], axis=1)                   # (1, 3D) f32
    return a2, wkv, b_all, wo_bf


def aft_reference(x, w_aft, wk, bk, wv, bv, wo, bo):
    """Pure-JAX f32 re-statement of the PyTorch forward (ground truth)."""
    n_b, S, D = x.shape
    H = w_aft.shape[0]
    hd = D // H
    k = (jnp.einsum("nsd,de->nse", x, wk,
                    precision=lax.Precision.HIGHEST) + bk).reshape(n_b, S, H, hd)
    v = (jnp.einsum("nsd,de->nse", x, wv,
                    precision=lax.Precision.HIGHEST) + bv).reshape(n_b, S, H, hd)
    t_idx = jnp.arange(S)[:, None]
    i_idx = jnp.arange(S)[None, :]
    a = jnp.exp(w_aft) * (i_idx <= t_idx)                   # (H, S, S)
    ek = jnp.exp(k)
    num = jnp.einsum("hts,nshd->nthd", a, ek * v, precision=lax.Precision.HIGHEST)
    den = jnp.einsum("hts,nshd->nthd", a, ek, precision=lax.Precision.HIGHEST)
    aft = (num / den).reshape(n_b, S, D)
    return jnp.einsum("nsd,de->nse", aft, wo,
                      precision=lax.Precision.HIGHEST) + bo


def make_params(key):
    ks = jax.random.split(key, 7)
    s = 0.1
    wk = s * jax.random.normal(ks[0], (DIM, DIM), jnp.float32)
    bk = s * jax.random.normal(ks[1], (1, DIM), jnp.float32)
    wv = s * jax.random.normal(ks[2], (DIM, DIM), jnp.float32)
    bv = s * jax.random.normal(ks[3], (1, DIM), jnp.float32)
    wo = s * jax.random.normal(ks[4], (DIM, DIM), jnp.float32)
    bo = s * jax.random.normal(ks[5], (1, DIM), jnp.float32)
    w_aft = s * jax.random.normal(ks[6], (HEADS, SEQ, SEQ), jnp.float32)
    return w_aft, wk, bk, wv, bv, wo, bo


if __name__ == "__main__":
    key = jax.random.PRNGKey(0)
    kx, kp = jax.random.split(key)
    x = jax.random.normal(kx, (N, SEQ, DIM), jnp.float32)
    w_aft, wk, bk, wv, bv, wo, bo = make_params(kp)

    # One-time parameter prep (masked positional term, fused/bf16 weights,
    # packed biases) — NOT part of the per-call forward.
    a2, wkv, b_all, wo_bf = prepare_params(w_aft, wk, bk, wv, bv, wo, bo)

    out = aft_forward(x, a2, wkv, b_all, wo_bf)
    out = jax.block_until_ready(out)

    ref = aft_reference(x, w_aft, wk, bk, wv, bv, wo, bo)
    # Tolerance sized for bf16 MXU operands (two chained bf16 matmuls with f32
    # accumulation) plus the approx reciprocal, vs. the f32 HIGHEST reference.
    np.testing.assert_allclose(np.asarray(out), np.asarray(ref),
                               rtol=2e-2, atol=1e-2)
    print("KERNEL_OK")
</pallas_src>

<mosaic_0001>
module attributes {stable_mosaic.version = 11 : i64} {
  func.func @aft_kernel(%arg0: memref<16x32xf32, #tpu.memory_space<vmem>>, %arg1: memref<8x8x64xf32, #tpu.memory_space<vmem>>, %arg2: memref<32x64xbf16, #tpu.memory_space<vmem>>, %arg3: memref<1x96xf32, #tpu.memory_space<vmem>>, %arg4: memref<32x32xbf16, #tpu.memory_space<vmem>>, %arg5: memref<16x32xf32, #tpu.memory_space<vmem>>) attributes {dimension_semantics = [], scalar_prefetch = 0 : i64, scratch_operands = 0 : i64, tpu.core_type = #tpu.core_type<tc>} {
    %c0 = arith.constant 0 : index
    %c0_0 = arith.constant 0 : index
    %0 = vector.load %arg0[%c0, %c0_0] : memref<16x32xf32, #tpu.memory_space<vmem>>, vector<16x32xf32>
    %1 = arith.truncf %0 : vector<16x32xf32> to vector<16x32xbf16>
    %c0_1 = arith.constant 0 : index
    %c0_2 = arith.constant 0 : index
    %2 = vector.load %arg2[%c0_1, %c0_2] : memref<32x64xbf16, #tpu.memory_space<vmem>>, vector<32x64xbf16>
    %cst = arith.constant dense<0.000000e+00> : vector<16x64xf32>
    %3 = tpu.matmul %1, %2, %cst {dimension_numbers = #tpu.dot_dimension_numbers<[1], [0], [0], [1], [0, 0, 1, 1], [], []>} : vector<16x32xbf16>, vector<32x64xbf16>, vector<16x64xf32> -> vector<16x64xf32>
    %c0_3 = arith.constant 0 : index
    %c0_4 = arith.constant 0 : index
    %4 = vector.load %arg3[%c0_3, %c0_4] : memref<1x96xf32, #tpu.memory_space<vmem>>, vector<1x64xf32>
    %5 = vector.broadcast %4 : vector<1x64xf32> to vector<16x64xf32>
    %6 = arith.addf %3, %5 : vector<16x64xf32>
    %7 = vector.extract_strided_slice %6 {offsets = [0, 0], sizes = [16, 32], strides = [1, 1]} : vector<16x64xf32> to vector<16x32xf32>
    %8 = vector.extract_strided_slice %6 {offsets = [0, 32], sizes = [16, 32], strides = [1, 1]} : vector<16x64xf32> to vector<16x32xf32>
    %9 = math.exp %7 : vector<16x32xf32>
    %10 = arith.mulf %9, %8 : vector<16x32xf32>
    %11 = tpu.concatenate %10, %9 in 1 : vector<16x32xf32>, vector<16x32xf32> -> vector<16x64xf32>
    %12 = vector.shape_cast %11 : vector<16x64xf32> to vector<2x8x64xf32>
    %c0_5 = arith.constant 0 : index
    %c0_6 = arith.constant 0 : index
    %c0_7 = arith.constant 0 : index
    %13 = vector.load %arg1[%c0_5, %c0_6, %c0_7] : memref<8x8x64xf32, #tpu.memory_space<vmem>>, vector<8x8x64xf32>
    %14 = vector.shape_cast %13 : vector<8x8x64xf32> to vector<1x8x8x64xf32>
    %15 = vector.shape_cast %12 : vector<2x8x64xf32> to vector<2x1x8x64xf32>
    %16 = vector.broadcast %14 : vector<1x8x8x64xf32> to vector<2x8x8x64xf32>
    %17 = vector.broadcast %15 : vector<2x1x8x64xf32> to vector<2x8x8x64xf32>
    %18 = arith.mulf %16, %17 : vector<2x8x8x64xf32>
    %cst_8 = arith.constant dense<0.000000e+00> : vector<2x8x64xf32>
    %19 = vector.multi_reduction <add>, %18, %cst_8 [2] : vector<2x8x8x64xf32> to vector<2x8x64xf32>
    %20 = vector.shape_cast %19 : vector<2x8x64xf32> to vector<16x64xf32>
    %21 = vector.extract_strided_slice %20 {offsets = [0, 0], sizes = [16, 32], strides = [1, 1]} : vector<16x64xf32> to vector<16x32xf32>
    %22 = vector.extract_strided_slice %20 {offsets = [0, 32], sizes = [16, 32], strides = [1, 1]} : vector<16x64xf32> to vector<16x32xf32>
    %23 = tpu.reciprocal %22 {approx = true} : vector<16x32xf32> -> vector<16x32xf32>
    %24 = arith.mulf %21, %23 : vector<16x32xf32>
    %25 = arith.truncf %24 : vector<16x32xf32> to vector<16x32xbf16>
    %c0_9 = arith.constant 0 : index
    %c0_10 = arith.constant 0 : index
    %26 = vector.load %arg4[%c0_9, %c0_10] : memref<32x32xbf16, #tpu.memory_space<vmem>>, vector<32x32xbf16>
    %cst_11 = arith.constant dense<0.000000e+00> : vector<16x32xf32>
    %27 = tpu.matmul %25, %26, %cst_11 {dimension_numbers = #tpu.dot_dimension_numbers<[1], [0], [0], [1], [0, 0, 1, 1], [], []>} : vector<16x32xbf16>, vector<32x32xbf16>, vector<16x32xf32> -> vector<16x32xf32>
    %c0_12 = arith.constant 0 : index
    %c64 = arith.constant 64 : index
    %28 = vector.load %arg3[%c0_12, %c64] : memref<1x96xf32, #tpu.memory_space<vmem>>, vector<1x32xf32>
    %29 = vector.broadcast %28 : vector<1x32xf32> to vector<16x32xf32>
    %30 = arith.addf %27, %29 : vector<16x32xf32>
    %c0_13 = arith.constant 0 : index
    %c0_14 = arith.constant 0 : index
    %31 = vector.load %arg5[%c0_13, %c0_14] : memref<16x32xf32, #tpu.memory_space<vmem>>, vector<16x32xf32>
    tpu.vector_store %arg5[%c0_13, %c0_14], %30 {strides = array<i32>} : memref<16x32xf32, #tpu.memory_space<vmem>>, vector<16x32xf32>,
    return
  }
}

</mosaic_0001>

<llo_original>
// kernel: aft_forward.1
$region0: #{aft_forward.1}
  #allocation0 [shape = 'u32[]', space=smem, size = 0x4, offset = 0x4, fixed_abs, tag = 'smem constant byte address 0x4 - core index']
  #allocation1 [shape = 'u32[72,128]{1,0:T(1,128)}', space=vmem, size = 0x9000, scoped, tag = 'internal scratch']
  %s0 = inlined_call_operand.hbm [shape: f32[16,32], index: 0, kind: input, shape index: {}]
  %s1 = inlined_call_operand.hbm [shape: f32[8,8,64], index: 1, kind: input, shape index: {}]
  %s2 = inlined_call_operand.hbm [shape: bf16[32,64], index: 2, kind: input, shape index: {}]
  %s3 = inlined_call_operand.vmem [shape: f32[1,96], index: 3, kind: input, shape index: {}]
  %s4 = inlined_call_operand.hbm [shape: bf16[32,32], index: 4, kind: input, shape index: {}]
  %s5 = inlined_call_operand.hbm [shape: f32[16,32], index: 5, kind: output, shape index: {}]
  %s6 = sld [smem:[#allocation0]]
  $region46: #{aft_forward.1} parent=0
    _
  %s8 = ssub.s32 1, %s6
  %s9 = scalar_select 0, %s8, %s6
  $region1: #{aft_forward.1} parent=0
    #allocation2 [shape = 'u8[8192]{0}', space=vmem, size = 0x2000, scoped, tag = 'input window, operand 0, single buffered']
    #allocation3 [shape = 's32[1]{0}', space=sflag, size = 0x4, scoped, tag = 'scoped memory for aft_forward.1']
    #allocation4 [shape = 's32[1]{0}', space=sflag, size = 0x4, scoped, tag = 'scoped memory for aft_forward.1']
    #allocation5 [shape = 'u8[32768]{0}', space=vmem, size = 0x8000, scoped, tag = 'input window, operand 1, single buffered']
    #allocation6 [shape = 's32[1]{0}', space=sflag, size = 0x4, scoped, tag = 'scoped memory for aft_forward.1']
    #allocation7 [shape = 'u8[8192]{0}', space=vmem, size = 0x2000, scoped, tag = 'input window, operand 2, single buffered']
    #allocation8 [shape = 'u8[8192]{0}', space=vmem, size = 0x2000, scoped, tag = 'input window, operand 4, single buffered']
    #allocation9 [shape = 's32[1]{0}', space=sflag, size = 0x4, scoped, tag = 'scoped memory for aft_forward.1']
    #allocation10 [shape = 'u8[8192]{0}', space=vmem, size = 0x2000, scoped, tag = 'output window, operand 0, single buffered']
    %10 = vsyncpa [#allocation3], 0
    %11 = vsyncpa [#allocation6], 0
    %12 = vsyncpa [#allocation9], 0
    %13 = vsyncpa [#allocation4], 0
    // Predicated region
    $region2: #{aft_forward.1} parent=1 // pred_check
      _
    $region3: #{aft_forward.1} parent=1 // pred_check_branch
      %15 = sbr.rel (0) target = $region5
    $region4: #{aft_forward.1} parent=1 // pred_region
      %17 = vsyncadd [#allocation3], 0
      %s18 = sshll.u32 %s0, 4
      %s19 = int_to_ptr.hbm [resolvable:$true] %s18
      %s20 = sshll.u32 [#allocation2], 4
      %s21 = int_to_ptr.vmem [resolvable:$true] %s20
      %26 = dma.hbm_to_vmem [thread:$0]  %s19, 256, %s21, [#allocation3], 128, 128, 8
    $region5: #{aft_forward.1} parent=1 // pred_fallthru
      _
    // Predicated region
    $region6: #{aft_forward.1} parent=1 // pred_check
      _
    $region7: #{aft_forward.1} parent=1 // pred_check_branch
      %28 = sbr.rel (0) target = $region9
    $region8: #{aft_forward.1} parent=1 // pred_region
      %30 = vsyncadd [#allocation6], 0
      %s31 = sshll.u32 %s1, 4
      %s32 = int_to_ptr.hbm [resolvable:$true] %s31
      %s33 = sshll.u32 [#allocation5], 4
      %s34 = int_to_ptr.vmem [resolvable:$true] %s33
      %39 = dma.hbm_to_vmem [thread:$0]  %s32, 1024, %s34, [#allocation6], 128, 128, 8
    $region9: #{aft_forward.1} parent=1 // pred_fallthru
      _
    // Predicated region
    $region10: #{aft_forward.1} parent=1 // pred_check
      _
    $region11: #{aft_forward.1} parent=1 // pred_check_branch
      %41 = sbr.rel (0) target = $region13
    $region12: #{aft_forward.1} parent=1 // pred_region
      %43 = vsyncadd [#allocation6], 0
      %s44 = sshll.u32 %s2, 4
      %s45 = int_to_ptr.hbm [resolvable:$true] %s44
      %s46 = sshll.u32 [#allocation7], 4
      %s47 = int_to_ptr.vmem [resolvable:$true] %s46
      %52 = dma.hbm_to_vmem [thread:$0]  %s45, 256, %s47, [#allocation6], 64, 64, 4
    $region13: #{aft_forward.1} parent=1 // pred_fallthru
      _
    // Predicated region
    $region14: #{aft_forward.1} parent=1 // pred_check
      _
    $region15: #{aft_forward.1} parent=1 // pred_check_branch
      %54 = sbr.rel (0) target = $region17
    $region16: #{aft_forward.1} parent=1 // pred_region
      _
    $region17: #{aft_forward.1} parent=1 // pred_fallthru
      _
    // Predicated region
    $region18: #{aft_forward.1} parent=1 // pred_check
      _
    $region19: #{aft_forward.1} parent=1 // pred_check_branch
      %56 = sbr.rel (0) target = $region21
    $region20: #{aft_forward.1} parent=1 // pred_region
      %58 = vsyncadd [#allocation9], 0
      %s59 = sshll.u32 %s4, 4
      %s60 = int_to_ptr.hbm [resolvable:$true] %s59
      %s61 = sshll.u32 [#allocation8], 4
      %s62 = int_to_ptr.vmem [resolvable:$true] %s61
      %67 = dma.hbm_to_vmem [thread:$0]  %s60, 256, %s62, [#allocation9], 64, 64, 4
    $region21: #{aft_forward.1} parent=1 // pred_fallthru
      _
    // Predicated region
    $region22: #{aft_forward.1} parent=1 // pred_check
      _
    $region23: #{aft_forward.1} parent=1 // pred_check_branch
      %69 = sbr.rel (0) target = $region25
    $region24: #{aft_forward.1} parent=1 // pred_region
      %71 = dma.done [#allocation3], 256
    $region25: #{aft_forward.1} parent=1 // pred_fallthru
      _
    // Predicated region
    $region26: #{aft_forward.1} parent=1 // pred_check
      _
    $region27: #{aft_forward.1} parent=1 // pred_check_branch
      %73 = sbr.rel (0) target = $region29
    $region28: #{aft_forward.1} parent=1 // pred_region
      %75 = dma.done [#allocation6], 1024
    $region29: #{aft_forward.1} parent=1 // pred_fallthru
      _
    // Predicated region
    $region30: #{aft_forward.1} parent=1 // pred_check
      _
    $region31: #{aft_forward.1} parent=1 // pred_check_branch
      %77 = sbr.rel (0) target = $region33
    $region32: #{aft_forward.1} parent=1 // pred_region
      %79 = dma.done [#allocation6], 256
    $region33: #{aft_forward.1} parent=1 // pred_fallthru
      _
    // Predicated region
    $region34: #{aft_forward.1} parent=1 // pred_check
      _
    $region35: #{aft_forward.1} parent=1 // pred_check_branch
      %81 = sbr.rel (0) target = $region37
    $region36: #{aft_forward.1} parent=1 // pred_region
      %83 = dma.done [#allocation9], 256
    $region37: #{aft_forward.1} parent=1 // pred_fallthru
      _
    %v85 = vld [vmem:[#allocation2] sm:$0xff]
    %v86 = vld [vmem:[#allocation2 + $0x8] sm:$0xff]
    %v87 = vpack.c.bf16 %v86, %v85
    %v88 = vld [vmem:[#allocation7] sm:$0xf]
    %v89 = vld [vmem:[#allocation7 + $0x4] sm:$0xf]
    %v90 = vld [vmem:[#allocation7 + $0x8] sm:$0xf]
    %v91 = vld [vmem:[#allocation7 + $0xc] sm:$0xf]
    %v92 = vld [vmem:[%s3] sm:$0x1]
    %v94 = vperm.slane %v92, 0
    %v100 = vunpack.c.l.b16 %v88
    %v101 = vunpack.c.l.b16 %v89
    %v102 = vunpack.c.l.b16 %v90
    %v103 = vunpack.c.l.b16 %v91
    %v104 = vpack.c.b16 %v101, %v100
    %v105 = vpack.c.b16 %v103, %v102
    %vm108 = vcmask 261120
    %v110 = vsel %vm108, %v87, 0
    %112 = vmatpush.bf16.msra.mxu0 0
    %113 = vmatpush.bf16.msra.mxu0 0
    %114 = vmatpush.bf16.msra.mxu0 0
    %115 = vmatpush.bf16.msra.mxu0 0
    %116 = vmatpush.bf16.msra.mxu0 0
    %117 = vmatpush.bf16.msra.mxu0 0
    %118 = vmatpush.bf16.msra.mxu0 %v105
    %119 = vmatpush.bf16.msra.mxu0 %v104
    %120 = vmatmul.bf16.gmra.mxu0 %v110
    %v121 = vpop.f32.mrf.mxu0
    %v122 = vadd.f32 %v94, %v121
    %v123 = vpop.f32.mrf.mxu0
    %v124 = vadd.f32 %v94, %v123
    %125 = vdwg.mxu0
    %v126 = vmul.f32 %v122, 1.442695
    %v127 = vpow.pop %v126
    %v128 = vmul.f32 %v124, 1.442695
    %v129 = vpow.pop %v128
    %132 = vrot.lane.b32.xlu0 %v122, 96
    %v133 = vpop.permute.xlu0 %132
    %134 = vrot.lane.b32.xlu0 %v124, 96
    %v135 = vpop.permute.xlu0 %134
    %v138 = vmul.f32 %v127, %v133
    %v139 = vmul.f32 %v129, %v135
    %142 = vrot.lane.b32.xlu0 %v127, 32
    %v143 = vpop.permute.xlu0 %142
    %144 = vrot.lane.b32.xlu0 %v129, 32
    %v145 = vpop.permute.xlu0 %144
    %v148 = vsel %vm108, %v138, %v143
    %v149 = vsel %vm108, %v139, %v145
    %v150 = vld [vmem:[#allocation5] sm:$0xff]
    %v151 = vld [vmem:[#allocation5 + $0x8] sm:$0xff]
    %v152 = vld [vmem:[#allocation5 + $0x10] sm:$0xff]
    %v153 = vld [vmem:[#allocation5 + $0x18] sm:$0xff]
    %v154 = vld [vmem:[#allocation5 + $0x20] sm:$0xff]
    %v155 = vld [vmem:[#allocation5 + $0x28] sm:$0xff]
    %v156 = vld [vmem:[#allocation5 + $0x30] sm:$0xff]
    %v157 = vld [vmem:[#allocation5 + $0x38] sm:$0xff]
    %v158 = vmul.f32 %v150, %v148
    %v159 = vmul.f32 %v151, %v148
    %v160 = vmul.f32 %v152, %v148
    %v161 = vmul.f32 %v153, %v148
    %v162 = vmul.f32 %v154, %v148
    %v163 = vmul.f32 %v155, %v148
    %v164 = vmul.f32 %v156, %v148
    %v165 = vmul.f32 %v157, %v148
    %v166 = vmul.f32 %v150, %v149
    %v167 = vmul.f32 %v151, %v149
    %v168 = vmul.f32 %v152, %v149
    %v169 = vmul.f32 %v153, %v149
    %v170 = vmul.f32 %v154, %v149
    %v171 = vmul.f32 %v155, %v149
    %v172 = vmul.f32 %v156, %v149
    %v173 = vmul.f32 %v157, %v149
    %vm174 = vcmask 523264
    %v175 = vsel %vm174, %v158, 0.0
    %v176 = vrot.slane %v175, 4
    %v177 = vadd.f32 %v175, %v176
    %v178 = vrot.slane %v177, 2
    %v179 = vadd.f32 %v177, %v178
    %v180 = vrot.slane %v179, 1
    %v181 = vadd.f32 %v179, %v180
    %v182 = vsel %vm174, %v159, 0.0
    %v183 = vrot.slane %v182, 4
    %v184 = vadd.f32 %v182, %v183
    %v185 = vrot.slane %v184, 2
    %v186 = vadd.f32 %v184, %v185
    %v187 = vrot.slane %v186, 1
    %v188 = vadd.f32 %v186, %v187
    %v189 = vsel %vm174, %v160, 0.0
    %v190 = vrot.slane %v189, 4
    %v191 = vadd.f32 %v189, %v190
    %v192 = vrot.slane %v191, 2
    %v193 = vadd.f32 %v191, %v192
    %v194 = vrot.slane %v193, 1
    %v195 = vadd.f32 %v193, %v194
    %v196 = vsel %vm174, %v161, 0.0
    %v197 = vrot.slane %v196, 4
    %v198 = vadd.f32 %v196, %v197
    %v199 = vrot.slane %v198, 2
    %v200 = vadd.f32 %v198, %v199
    %v201 = vrot.slane %v200, 1
    %v202 = vadd.f32 %v200, %v201
    %v203 = vsel %vm174, %v162, 0.0
    %v204 = vrot.slane %v203, 4
    %v205 = vadd.f32 %v203, %v204
    %v206 = vrot.slane %v205, 2
    %v207 = vadd.f32 %v205, %v206
    %v208 = vrot.slane %v207, 1
    %v209 = vadd.f32 %v207, %v208
    %v210 = vsel %vm174, %v163, 0.0
    %v211 = vrot.slane %v210, 4
    %v212 = vadd.f32 %v210, %v211
    %v213 = vrot.slane %v212, 2
    %v214 = vadd.f32 %v212, %v213
    %v215 = vrot.slane %v214, 1
    %v216 = vadd.f32 %v214, %v215
    %v217 = vsel %vm174, %v164, 0.0
    %v218 = vrot.slane %v217, 4
    %v219 = vadd.f32 %v217, %v218
    %v220 = vrot.slane %v219, 2
    %v221 = vadd.f32 %v219, %v220
    %v222 = vrot.slane %v221, 1
    %v223 = vadd.f32 %v221, %v222
    %v224 = vsel %vm174, %v165, 0.0
    %v225 = vrot.slane %v224, 4
    %v226 = vadd.f32 %v224, %v225
    %v227 = vrot.slane %v226, 2
    %v228 = vadd.f32 %v226, %v227
    %v229 = vrot.slane %v228, 1
    %v230 = vadd.f32 %v228, %v229
    %v231 = vsel %vm174, %v166, 0.0
    %v232 = vrot.slane %v231, 4
    %v233 = vadd.f32 %v231, %v232
    %v234 = vrot.slane %v233, 2
    %v235 = vadd.f32 %v233, %v234
    %v236 = vrot.slane %v235, 1
    %v237 = vadd.f32 %v235, %v236
    %v238 = vsel %vm174, %v167, 0.0
    %v239 = vrot.slane %v238, 4
    %v240 = vadd.f32 %v238, %v239
    %v241 = vrot.slane %v240, 2
    %v242 = vadd.f32 %v240, %v241
    %v243 = vrot.slane %v242, 1
    %v244 = vadd.f32 %v242, %v243
    %v245 = vsel %vm174, %v168, 0.0
    %v246 = vrot.slane %v245, 4
    %v247 = vadd.f32 %v245, %v246
    %v248 = vrot.slane %v247, 2
    %v249 = vadd.f32 %v247, %v248
    %v250 = vrot.slane %v249, 1
    %v251 = vadd.f32 %v249, %v250
    %v252 = vsel %vm174, %v169, 0.0
    %v253 = vrot.slane %v252, 4
    %v254 = vadd.f32 %v252, %v253
    %v255 = vrot.slane %v254, 2
    %v256 = vadd.f32 %v254, %v255
    %v257 = vrot.slane %v256, 1
    %v258 = vadd.f32 %v256, %v257
    %v259 = vsel %vm174, %v170, 0.0
    %v260 = vrot.slane %v259, 4
    %v261 = vadd.f32 %v259, %v260
    %v262 = vrot.slane %v261, 2
    %v263 = vadd.f32 %v261, %v262
    %v264 = vrot.slane %v263, 1
    %v265 = vadd.f32 %v263, %v264
    %v266 = vsel %vm174, %v171, 0.0
    %v267 = vrot.slane %v266, 4
    %v268 = vadd.f32 %v266, %v267
    %v269 = vrot.slane %v268, 2
    %v270 = vadd.f32 %v268, %v269
    %v271 = vrot.slane %v270, 1
    %v272 = vadd.f32 %v270, %v271
    %v273 = vsel %vm174, %v172, 0.0
    %v274 = vrot.slane %v273, 4
    %v275 = vadd.f32 %v273, %v274
    %v276 = vrot.slane %v275, 2
    %v277 = vadd.f32 %v275, %v276
    %v278 = vrot.slane %v277, 1
    %v279 = vadd.f32 %v277, %v278
    %v280 = vsel %vm174, %v173, 0.0
    %v281 = vrot.slane %v280, 4
    %v282 = vadd.f32 %v280, %v281
    %v283 = vrot.slane %v282, 2
    %v284 = vadd.f32 %v282, %v283
    %v285 = vrot.slane %v284, 1
    %v286 = vadd.f32 %v284, %v285
    %v287 = vrcp.pop %v181
    %v288 = vrcp.pop %v188
    %v289 = vrcp.pop %v195
    %v290 = vrcp.pop %v202
    %v291 = vrcp.pop %v209
    %v292 = vrcp.pop %v216
    %v293 = vrcp.pop %v223
    %v294 = vrcp.pop %v230
    %v295 = vrcp.pop %v237
    %v296 = vrcp.pop %v244
    %v297 = vrcp.pop %v251
    %v298 = vrcp.pop %v258
    %v299 = vrcp.pop %v265
    %v300 = vrcp.pop %v272
    %v301 = vrcp.pop %v279
    %v302 = vrcp.pop %v286
    %319 = vrot.lane.b32.xlu0 %v287, 96
    %v320 = vpop.permute.xlu0 %319
    %321 = vrot.lane.b32.xlu0 %v288, 96
    %v322 = vpop.permute.xlu0 %321
    %323 = vrot.lane.b32.xlu0 %v289, 96
    %v324 = vpop.permute.xlu0 %323
    %325 = vrot.lane.b32.xlu0 %v290, 96
    %v326 = vpop.permute.xlu0 %325
    %327 = vrot.lane.b32.xlu0 %v291, 96
    %v328 = vpop.permute.xlu0 %327
    %329 = vrot.lane.b32.xlu0 %v292, 96
    %v330 = vpop.permute.xlu0 %329
    %331 = vrot.lane.b32.xlu0 %v293, 96
    %v332 = vpop.permute.xlu0 %331
    %333 = vrot.lane.b32.xlu0 %v294, 96
    %v334 = vpop.permute.xlu0 %333
    %335 = vrot.lane.b32.xlu0 %v295, 96
    %v336 = vpop.permute.xlu0 %335
    %337 = vrot.lane.b32.xlu0 %v296, 96
    %v338 = vpop.permute.xlu0 %337
    %339 = vrot.lane.b32.xlu0 %v297, 96
    %v340 = vpop.permute.xlu0 %339
    %341 = vrot.lane.b32.xlu0 %v298, 96
    %v342 = vpop.permute.xlu0 %341
    %343 = vrot.lane.b32.xlu0 %v299, 96
    %v344 = vpop.permute.xlu0 %343
    %345 = vrot.lane.b32.xlu0 %v300, 96
    %v346 = vpop.permute.xlu0 %345
    %347 = vrot.lane.b32.xlu0 %v301, 96
    %v348 = vpop.permute.xlu0 %347
    %349 = vrot.lane.b32.xlu0 %v302, 96
    %v350 = vpop.permute.xlu0 %349
    %v367 = vmul.f32 %v181, %v320
    %v368 = vmul.f32 %v188, %v322
    %v369 = vmul.f32 %v195, %v324
    %v370 = vmul.f32 %v202, %v326
    %v371 = vmul.f32 %v209, %v328
    %v372 = vmul.f32 %v216, %v330
    %v373 = vmul.f32 %v223, %v332
    %v374 = vmul.f32 %v230, %v334
    %v375 = vmul.f32 %v237, %v336
    %v376 = vmul.f32 %v244, %v338
    %v377 = vmul.f32 %v251, %v340
    %v378 = vmul.f32 %v258, %v342
    %v379 = vmul.f32 %v265, %v344
    %v380 = vmul.f32 %v272, %v346
    %v381 = vmul.f32 %v279, %v348
    %v382 = vmul.f32 %v286, %v350
    %v383 = vpack.c.bf16 %v367, %v367
    %v384 = vpack.c.bf16 %v368, %v368
    %v385 = vpack.c.bf16 %v369, %v369
    %v386 = vpack.c.bf16 %v370, %v370
    %v387 = vpack.c.bf16 %v371, %v371
    %v388 = vpack.c.bf16 %v372, %v372
    %v389 = vpack.c.bf16 %v373, %v373
    %v390 = vpack.c.bf16 %v374, %v374
    %v391 = vpack.c.bf16 %v375, %v375
    %v392 = vpack.c.bf16 %v376, %v376
    %v393 = vpack.c.bf16 %v377, %v377
    %v394 = vpack.c.bf16 %v378, %v378
    %v395 = vpack.c.bf16 %v379, %v379
    %v396 = vpack.c.bf16 %v380, %v380
    %v397 = vpack.c.bf16 %v381, %v381
    %v398 = vpack.c.bf16 %v382, %v382
    %v399 = vld [vmem:[#allocation8] sm:$0xf]
    %v400 = vld [vmem:[#allocation8 + $0x4] sm:$0xf]
    %v401 = vld [vmem:[#allocation8 + $0x8] sm:$0xf]
    %v402 = vld [vmem:[#allocation8 + $0xc] sm:$0xf]
    %v419 = vunpack.c.l.b16 %v383
    %v420 = vunpack.c.l.b16 %v384
    %v421 = vunpack.c.l.b16 %v385
    %v422 = vunpack.c.l.b16 %v386
    %v423 = vunpack.c.l.b16 %v387
    %v424 = vunpack.c.l.b16 %v388
    %v425 = vunpack.c.l.b16 %v389
    %v426 = vunpack.c.l.b16 %v390
    %v427 = vunpack.c.l.b16 %v391
    %v428 = vunpack.c.l.b16 %v392
    %v429 = vunpack.c.l.b16 %v393
    %v430 = vunpack.c.l.b16 %v394
    %v431 = vunpack.c.l.b16 %v395
    %v432 = vunpack.c.l.b16 %v396
    %v433 = vunpack.c.l.b16 %v397
    %v434 = vunpack.c.l.b16 %v398
    %v435 = vrot.slane %v420, 7
    %vm436 = vcmask 1041409
    %v437 = vsel %vm436, %v435, %v419
    %v438 = vrot.slane %v421, 6
    %vm439 = vcmask 1042434
    %v440 = vsel %vm439, %v438, %v437
    %v441 = vrot.slane %v422, 5
    %vm442 = vcmask 1043459
    %v443 = vsel %vm442, %v441, %v440
    %v444 = vrot.slane %v423, 4
    %vm445 = vcmask 1044484
    %v446 = vsel %vm445, %v444, %v443
    %v447 = vrot.slane %v424, 3
    %vm448 = vcmask 1045509
    %v449 = vsel %vm448, %v447, %v446
    %v450 = vrot.slane %v425, 2
    %vm451 = vcmask 1046534
    %v452 = vsel %vm451, %v450, %v449
    %v453 = vrot.slane %v426, 1
    %vm454 = vcmask 1047559
    %v455 = vsel %vm454, %v453, %v452
    %v456 = vrot.slane %v428, 7
    %v457 = vsel %vm436, %v456, %v427
    %v458 = vrot.slane %v429, 6
    %v459 = vsel %vm439, %v458, %v457
    %v460 = vrot.slane %v430, 5
    %v461 = vsel %vm442, %v460, %v459
    %v462 = vrot.slane %v431, 4
    %v463 = vsel %vm445, %v462, %v461
    %v464 = vrot.slane %v432, 3
    %v465 = vsel %vm448, %v464, %v463
    %v466 = vrot.slane %v433, 2
    %v467 = vsel %vm451, %v466, %v465
    %v468 = vrot.slane %v434, 1
    %v469 = vsel %vm454, %v468, %v467
    %v470 = vpack.c.b16 %v469, %v455
    %v475 = vunpack.c.l.b16 %v399
    %v476 = vunpack.c.l.b16 %v400
    %v477 = vunpack.c.l.b16 %v401
    %v478 = vunpack.c.l.b16 %v402
    %v479 = vpack.c.b16 %v476, %v475
    %v480 = vpack.c.b16 %v478, %v477
    %483 = vrot.lane.b32.xlu0 %v94, 64
    %v484 = vpop.permute.xlu0 %483
    %v487 = vsel %vm108, %v470, 0
    %489 = vmatpush.bf16.msra.mxu0 0
    %490 = vmatpush.bf16.msra.mxu0 0
    %491 = vmatpush.bf16.msra.mxu0 0
    %492 = vmatpush.bf16.msra.mxu0 0
    %493 = vmatpush.bf16.msra.mxu0 0
    %494 = vmatpush.bf16.msra.mxu0 0
    %495 = vmatpush.bf16.msra.mxu0 %v480
    %496 = vmatpush.bf16.msra.mxu0 %v479
    %497 = vmatmul.bf16.gmra.mxu0 %v487
    %v498 = vpop.f32.mrf.mxu0
    %v499 = vadd.f32 %v484, %v498
    %v500 = vpop.f32.mrf.mxu0
    %v501 = vadd.f32 %v484, %v500
    %502 = vdwg.mxu0
    %503 = vst.msk [vmem:[#allocation10] sm:$0xff] %vm108, %v499
    %504 = vst.msk [vmem:[#allocation10 + $0x8] sm:$0xff] %vm108, %v501
    // Predicated region
    $region38: #{aft_forward.1} parent=1 // pred_check
      _
    $region39: #{aft_forward.1} parent=1 // pred_check_branch
      %506 = sbr.rel (0) target = $region41
    $region40: #{aft_forward.1} parent=1 // pred_region
      %508 = vsyncadd [#allocation4], 0
      %s509 = sshll.u32 [#allocation10], 4
      %s510 = int_to_ptr.vmem [resolvable:$true] %s509
      %s511 = sshll.u32 %s5, 4
      %s512 = int_to_ptr.hbm [resolvable:$true] %s511
      %517 = dma.vmem_to_hbm [thread:$0]  %s510, 256, %s512, [#allocation4], 128, 128, 8
    $region41: #{aft_forward.1} parent=1 // pred_fallthru
      _
    // Predicated region
    $region42: #{aft_forward.1} parent=1 // pred_check
      _
    $region43: #{aft_forward.1} parent=1 // pred_check_branch
      %519 = sbr.rel (0) target = $region45
    $region44: #{aft_forward.1} parent=1 // pred_region
      %521 = dma.done [#allocation4], 256
    $region45: #{aft_forward.1} parent=1 // pred_fallthru
      _
    %522 = vsyncpa [#allocation3], 1
    %523 = vsyncpa [#allocation6], 1
    %524 = vsyncpa [#allocation9], 1
    %525 = vsyncpa [#allocation4], 1

</llo_original>
